<compile_context>
chip_gen: v7x
topology: tpu7x:2x2x1
jax: 0.10.0
libtpu: 0.0.40
codegen_flags: <defaults>
</compile_context>

<pallas_src>
import jax
import jax.numpy as jnp
from jax import lax
from jax.experimental import pallas as pl
from jax.experimental.pallas import tpu as pltpu

INPUT_DIM = 16
HIDDEN_DIM = 32
OUTPUT_DIM = 1
NUM_LAYERS = 4
BATCH = 8


def _round_up(n, m):
    return ((n + m - 1) // m) * m


# ----------------------------------------------------------------------------
# Kernel
# ----------------------------------------------------------------------------
def _lstm_cell(gates, H):
    # gates rows = [ 0.5*z_i | z_g | 0.5*z_o ]  (pre-scaled in the wrapper so
    # sigmoid(z) == 0.5*tanh(z/2) + 0.5 -> a single tanh over the whole tile).
    t = jnp.tanh(gates)                      # one EUP pass over (3H, TB)
    i = 0.5 * t[0 * H:1 * H, :] + 0.5        # sigmoid(i-gate)
    g = t[1 * H:2 * H, :]                    # tanh(g-gate)
    o = 0.5 * t[2 * H:3 * H, :] + 0.5        # sigmoid(o-gate)
    c = i * g                                # c0 == 0; f-gate dropped (dead)
    return o * jnp.tanh(c)                   # (H, TB) f32


def lstm_model_kernel(x_ref, w0_ref, b0_ref, w_rest_ref, b_rest_ref,
                      w_fc_ref, b_fc_ref, out_ref):
    H = HIDDEN_DIM
    mm_dtype = w0_ref.dtype    # f32 by default; bf16 if prep_params(use_bf16=True)

    # Layer 0 (feature_embedding folded in).  x arrives in its native
    # (TILE_B, D_in) layout; contract its LAST axis against w0's last axis so
    # no wrapper-side transpose/pad pass over x is needed.  Result lands with
    # batch on the lane axis: (3H, TILE_B).
    x = x_ref[...].astype(mm_dtype)
    gates = lax.dot_general(w0_ref[...], x, (((1,), (1,)), ((), ())),
                            preferred_element_type=jnp.float32) + b0_ref[...]
    h = _lstm_cell(gates, H)

    # Layers 1 .. L-1 (accumulate in f32; optionally bf16 matmul operands).
    for layer in range(w_rest_ref.shape[0]):
        gates = jnp.dot(w_rest_ref[layer], h.astype(mm_dtype),
                        preferred_element_type=jnp.float32) + b_rest_ref[layer]
        h = _lstm_cell(gates, H)

    # fc_out (output_dim == 1): VPU broadcast-multiply + XLU sublane reduction
    # instead of an M=1 MXU matmul (which would stream the whole RHS for one
    # useful result row).  fc weights pre-halved -> sigmoid == 0.5*tanh + 0.5.
    logits = jnp.sum(w_fc_ref[...] * h, axis=0, keepdims=True) + b_fc_ref[...]
    out_ref[...] = 0.5 * jnp.tanh(logits) + 0.5      # (1, TILE_B), lane-dense


# ----------------------------------------------------------------------------
# Wrapper
# ----------------------------------------------------------------------------
def lstm_model_forward(x, kp, tile_b=8192):
    batch, d_in = x.shape
    assert kp["w_fc"].shape == (HIDDEN_DIM, 1), "kernel assumes output_dim == 1"

    # Lane-dense batch tiles: at least 128 lanes, a multiple of 128, no larger
    # than the (rounded-up) batch.  The 8192 default amortizes the ~0.35 us
    # per-grid-step overhead while keeping intermediates (~2 KB f32 per batch
    # column) far under VMEM.  On v7x, prefer a tile_b giving an EVEN number
    # of tiles so both TensorCores get work.
    tile_b = max(128, min(_round_up(tile_b, 128), _round_up(batch, 128)))
    num_tiles = pl.cdiv(batch, tile_b)
    padded_b = num_tiles * tile_b

    # Explicit VMEM budget: gates/tanh/h intermediates + x/out double buffers
    # scale with tile_b; weights are tiny.  Capped to fit v7x's 64 MiB per-TC.
    vmem_limit = int(min(64 * 1024 * 1024,
                         max(16 * 1024 * 1024, 3 * 1024 * tile_b + (2 << 20))))

    def full(a):
        # Weights/biases stay VMEM-resident: constant index_map across the grid.
        return pl.BlockSpec(a.shape, lambda i: (0,) * a.ndim)

    out = pl.pallas_call(
        lstm_model_kernel,
        out_shape=jax.ShapeDtypeStruct((1, padded_b), jnp.float32),
        grid=(num_tiles,),
        in_specs=[
            pl.BlockSpec((tile_b, d_in), lambda i: (i, 0)),   # x, native layout
            full(kp["w0"]), full(kp["b0"]),
            full(kp["w_rest"]), full(kp["b_rest"]),
            full(kp["w_fc"]), full(kp["b_fc"]),
        ],
        out_specs=pl.BlockSpec((1, tile_b), lambda i: (0, i)),
        compiler_params=pltpu.CompilerParams(
            dimension_semantics=("parallel",),
            vmem_limit_bytes=vmem_limit),
    )(x, kp["w0"], kp["b0"], kp["w_rest"], kp["b_rest"],
      kp["w_fc"], kp["b_fc"])
    return out[0, :batch]                    # matches torch .squeeze() for B>1


# ----------------------------------------------------------------------------
# Parameters (PyTorch layout) + exact rewrite into the kernel layout
# ----------------------------------------------------------------------------
def init_raw_params(key, input_dim, hidden_dim, output_dim, num_layers):
    n = 4 + 3 * num_layers
    keys = jax.random.split(key, n)
    s = 0.1
    k = iter(range(n))
    w_emb = jax.random.normal(keys[next(k)], (hidden_dim, input_dim), jnp.float32) * s
    b_emb = jax.random.normal(keys[next(k)], (hidden_dim,), jnp.float32) * s
    lstm = []
    for _ in range(num_layers):
        w_ih = jax.random.normal(keys[next(k)], (4 * hidden_dim, hidden_dim), jnp.float32) * s
        b_ih = jax.random.normal(keys[next(k)], (4 * hidden_dim,), jnp.float32) * s
        b_hh = jax.random.normal(keys[next(k)], (4 * hidden_dim,), jnp.float32) * s
        # W_hh is never used: seq_len == 1 and h0 == 0, so W_hh @ h0 == 0 exactly.
        lstm.append((w_ih, b_ih, b_hh))
    w_fc = jax.random.normal(keys[next(k)], (output_dim, hidden_dim), jnp.float32) * s
    b_fc = jax.random.normal(keys[next(k)], (output_dim,), jnp.float32) * s
    return {"w_emb": w_emb, "b_emb": b_emb, "lstm": lstm, "w_fc": w_fc, "b_fc": b_fc}


def prep_params(raw, use_bf16=False):
    """Exact rewrite: drop dead f-gate, fold biases, fold embedding into layer 0,
    pre-halve sigmoid gates/fc so the kernel only needs tanh.  use_bf16 casts
    only the matmul weights (biases / elementwise stay f32); it changes gate
    pre-activations at the ~1e-3 level, so gate it behind this flag."""
    H = raw["w_emb"].shape[0]
    layer_w, layer_b = [], []
    for (w_ih, b_ih, b_hh) in raw["lstm"]:
        b = b_ih + b_hh                                   # h0 == 0 -> fold biases
        w_i, w_g, w_o = w_ih[0:H], w_ih[2 * H:3 * H], w_ih[3 * H:4 * H]
        b_i, b_g, b_o = b[0:H], b[2 * H:3 * H], b[3 * H:4 * H]
        # gate order [i | g | o]; i,o rows halved for sigmoid-as-tanh.
        layer_w.append(jnp.concatenate([0.5 * w_i, w_g, 0.5 * w_o], axis=0))   # (3H, H)
        layer_b.append(jnp.concatenate([0.5 * b_i, b_g, 0.5 * b_o], axis=0))   # (3H,)

    # Fold feature_embedding into layer 0.
    w0 = layer_w[0] @ raw["w_emb"]                        # (3H, D_in)
    b0 = layer_w[0] @ raw["b_emb"] + layer_b[0]           # (3H,)

    n_rest = len(layer_w) - 1
    mm_dtype = jnp.bfloat16 if use_bf16 else jnp.float32
    return {
        "w0": w0.astype(mm_dtype),
        "b0": b0.reshape(3 * H, 1),
        "w_rest": jnp.stack(layer_w[1:], axis=0).astype(mm_dtype),            # (L-1, 3H, H)
        "b_rest": jnp.stack(layer_b[1:], axis=0).reshape(n_rest, 3 * H, 1),
        "w_fc": (0.5 * raw["w_fc"]).T,                                        # (H, 1) column
        "b_fc": (0.5 * raw["b_fc"]).reshape(1, 1),                            # (1, 1)
    }


# ----------------------------------------------------------------------------
# Pure-JAX reference (mirrors the PyTorch forward, eval mode)
# ----------------------------------------------------------------------------
def reference_forward(x, raw):
    H = raw["w_emb"].shape[0]
    h = x @ raw["w_emb"].T + raw["b_emb"]
    for (w_ih, b_ih, b_hh) in raw["lstm"]:
        gates = h @ w_ih.T + b_ih + b_hh                  # + h0 @ W_hh^T == 0
        i = jax.nn.sigmoid(gates[:, 0 * H:1 * H])
        f = jax.nn.sigmoid(gates[:, 1 * H:2 * H])
        g = jnp.tanh(gates[:, 2 * H:3 * H])
        o = jax.nn.sigmoid(gates[:, 3 * H:4 * H])
        c = f * 0.0 + i * g                               # c0 == 0
        h = o * jnp.tanh(c)
    return jnp.squeeze(jax.nn.sigmoid(h @ raw["w_fc"].T + raw["b_fc"]))


if __name__ == "__main__":
    key = jax.random.PRNGKey(0)
    k_x, k_p, k_x2 = jax.random.split(key, 3)

    raw = init_raw_params(k_p, INPUT_DIM, HIDDEN_DIM, OUTPUT_DIM, NUM_LAYERS)
    kp = prep_params(raw)                     # f32 path (exact to 1e-5)

    # Small demo batch (single lane-dense 128-wide tile; partial x read masked).
    x = jax.random.normal(k_x, (BATCH, INPUT_DIM), jnp.float32)
    out = jax.block_until_ready(lstm_model_forward(x, kp))
    ref = reference_forward(x, raw)
    assert out.shape == (BATCH,), out.shape
    assert jnp.allclose(out, ref, atol=1e-5, rtol=1e-5), (out, ref)

    # Exercise the multi-tile (gridded, partial-final-block) path as well.
    x2 = jax.random.normal(k_x2, (300, INPUT_DIM), jnp.float32)
    out2 = jax.block_until_ready(lstm_model_forward(x2, kp, tile_b=128))
    ref2 = reference_forward(x2, raw)
    assert out2.shape == (300,), out2.shape
    assert jnp.allclose(out2, ref2, atol=1e-5, rtol=1e-5)

    print("KERNEL_OK")
</pallas_src>

<mosaic_0001>
module attributes {stable_mosaic.version = 11 : i64} {
  func.func @lstm_model_kernel(%arg0: i32, %arg1: memref<128x16xf32, #tpu.memory_space<vmem>>, %arg2: memref<96x16xf32, #tpu.memory_space<vmem>>, %arg3: memref<96x1xf32, #tpu.memory_space<vmem>>, %arg4: memref<3x96x32xf32, #tpu.memory_space<vmem>>, %arg5: memref<3x96x1xf32, #tpu.memory_space<vmem>>, %arg6: memref<32x1xf32, #tpu.memory_space<vmem>>, %arg7: memref<1x1xf32, #tpu.memory_space<vmem>>, %arg8: memref<1x128xf32, #tpu.memory_space<vmem>>) attributes {dimension_semantics = [#tpu.dimension_semantics<parallel>], iteration_bounds = array<i64: 1>, scalar_prefetch = 0 : i64, scratch_operands = 0 : i64, tpu.core_type = #tpu.core_type<tc>, window_params = [{transform_indices = @transform_0, window_bounds = array<i64: 128, 16>}, {pipeline_mode = #tpu.pipeline_mode<synchronous>, transform_indices = @transform_1, window_bounds = array<i64: 96, 16>}, {pipeline_mode = #tpu.pipeline_mode<synchronous>, transform_indices = @transform_2, window_bounds = array<i64: 96, 1>}, {pipeline_mode = #tpu.pipeline_mode<synchronous>, transform_indices = @transform_3, window_bounds = array<i64: 3, 96, 32>}, {pipeline_mode = #tpu.pipeline_mode<synchronous>, transform_indices = @transform_4, window_bounds = array<i64: 3, 96, 1>}, {pipeline_mode = #tpu.pipeline_mode<synchronous>, transform_indices = @transform_5, window_bounds = array<i64: 32, 1>}, {pipeline_mode = #tpu.pipeline_mode<synchronous>, transform_indices = @transform_6, window_bounds = array<i64: 1, 1>}, {transform_indices = @transform_7, window_bounds = array<i64: 1, 128>}]} {
    %c0 = arith.constant 0 : index
    %c0_0 = arith.constant 0 : index
    %0 = vector.load %arg1[%c0, %c0_0] : memref<128x16xf32, #tpu.memory_space<vmem>>, vector<128x16xf32>
    %c0_1 = arith.constant 0 : index
    %c0_2 = arith.constant 0 : index
    %1 = vector.load %arg2[%c0_1, %c0_2] : memref<96x16xf32, #tpu.memory_space<vmem>>, vector<96x16xf32>
    %cst = arith.constant dense<0.000000e+00> : vector<96x128xf32>
    %2 = tpu.matmul %1, %0, %cst {dimension_numbers = #tpu.dot_dimension_numbers<[1], [1], [0], [0], [0, 0, 1, 0], [], []>} : vector<96x16xf32>, vector<128x16xf32>, vector<96x128xf32> -> vector<96x128xf32>
    %c0_3 = arith.constant 0 : index
    %c0_4 = arith.constant 0 : index
    %3 = vector.load %arg3[%c0_3, %c0_4] : memref<96x1xf32, #tpu.memory_space<vmem>>, vector<96x1xf32>
    %4 = vector.broadcast %3 : vector<96x1xf32> to vector<96x128xf32>
    %5 = arith.addf %2, %4 : vector<96x128xf32>
    %6 = math.tanh %5 : vector<96x128xf32>
    %7 = vector.extract_strided_slice %6 {offsets = [0, 0], sizes = [32, 128], strides = [1, 1]} : vector<96x128xf32> to vector<32x128xf32>
    %cst_5 = arith.constant 5.000000e-01 : f32
    %8 = vector.broadcast %cst_5 : f32 to vector<32x128xf32>
    %9 = arith.mulf %8, %7 : vector<32x128xf32>
    %cst_6 = arith.constant 5.000000e-01 : f32
    %10 = vector.broadcast %cst_6 : f32 to vector<32x128xf32>
    %11 = arith.addf %9, %10 : vector<32x128xf32>
    %12 = vector.extract_strided_slice %6 {offsets = [32, 0], sizes = [32, 128], strides = [1, 1]} : vector<96x128xf32> to vector<32x128xf32>
    %13 = vector.extract_strided_slice %6 {offsets = [64, 0], sizes = [32, 128], strides = [1, 1]} : vector<96x128xf32> to vector<32x128xf32>
    %cst_7 = arith.constant 5.000000e-01 : f32
    %14 = vector.broadcast %cst_7 : f32 to vector<32x128xf32>
    %15 = arith.mulf %14, %13 : vector<32x128xf32>
    %cst_8 = arith.constant 5.000000e-01 : f32
    %16 = vector.broadcast %cst_8 : f32 to vector<32x128xf32>
    %17 = arith.addf %15, %16 : vector<32x128xf32>
    %18 = arith.mulf %11, %12 : vector<32x128xf32>
    %19 = math.tanh %18 : vector<32x128xf32>
    %20 = arith.mulf %17, %19 : vector<32x128xf32>
    %c0_9 = arith.constant 0 : index
    %c0_10 = arith.constant 0 : index
    %c0_11 = arith.constant 0 : index
    %21 = vector.load %arg4[%c0_9, %c0_10, %c0_11] : memref<3x96x32xf32, #tpu.memory_space<vmem>>, vector<1x96x32xf32>
    %22 = vector.shape_cast %21 : vector<1x96x32xf32> to vector<96x32xf32>
    %cst_12 = arith.constant dense<0.000000e+00> : vector<96x128xf32>
    %23 = tpu.matmul %22, %20, %cst_12 {dimension_numbers = #tpu.dot_dimension_numbers<[1], [0], [0], [1], [0, 0, 1, 1], [], []>} : vector<96x32xf32>, vector<32x128xf32>, vector<96x128xf32> -> vector<96x128xf32>
    %c0_13 = arith.constant 0 : index
    %c0_14 = arith.constant 0 : index
    %c0_15 = arith.constant 0 : index
    %24 = vector.load %arg5[%c0_13, %c0_14, %c0_15] : memref<3x96x1xf32, #tpu.memory_space<vmem>>, vector<1x96x1xf32>
    %25 = vector.shape_cast %24 : vector<1x96x1xf32> to vector<96x1xf32>
    %26 = vector.broadcast %25 : vector<96x1xf32> to vector<96x128xf32>
    %27 = arith.addf %23, %26 : vector<96x128xf32>
    %28 = math.tanh %27 : vector<96x128xf32>
    %29 = vector.extract_strided_slice %28 {offsets = [0, 0], sizes = [32, 128], strides = [1, 1]} : vector<96x128xf32> to vector<32x128xf32>
    %cst_16 = arith.constant 5.000000e-01 : f32
    %30 = vector.broadcast %cst_16 : f32 to vector<32x128xf32>
    %31 = arith.mulf %30, %29 : vector<32x128xf32>
    %cst_17 = arith.constant 5.000000e-01 : f32
    %32 = vector.broadcast %cst_17 : f32 to vector<32x128xf32>
    %33 = arith.addf %31, %32 : vector<32x128xf32>
    %34 = vector.extract_strided_slice %28 {offsets = [32, 0], sizes = [32, 128], strides = [1, 1]} : vector<96x128xf32> to vector<32x128xf32>
    %35 = vector.extract_strided_slice %28 {offsets = [64, 0], sizes = [32, 128], strides = [1, 1]} : vector<96x128xf32> to vector<32x128xf32>
    %cst_18 = arith.constant 5.000000e-01 : f32
    %36 = vector.broadcast %cst_18 : f32 to vector<32x128xf32>
    %37 = arith.mulf %36, %35 : vector<32x128xf32>
    %cst_19 = arith.constant 5.000000e-01 : f32
    %38 = vector.broadcast %cst_19 : f32 to vector<32x128xf32>
    %39 = arith.addf %37, %38 : vector<32x128xf32>
    %40 = arith.mulf %33, %34 : vector<32x128xf32>
    %41 = math.tanh %40 : vector<32x128xf32>
    %42 = arith.mulf %39, %41 : vector<32x128xf32>
    %c1 = arith.constant 1 : index
    %c0_20 = arith.constant 0 : index
    %c0_21 = arith.constant 0 : index
    %43 = vector.load %arg4[%c1, %c0_20, %c0_21] : memref<3x96x32xf32, #tpu.memory_space<vmem>>, vector<1x96x32xf32>
    %44 = vector.shape_cast %43 : vector<1x96x32xf32> to vector<96x32xf32>
    %cst_22 = arith.constant dense<0.000000e+00> : vector<96x128xf32>
    %45 = tpu.matmul %44, %42, %cst_22 {dimension_numbers = #tpu.dot_dimension_numbers<[1], [0], [0], [1], [0, 0, 1, 1], [], []>} : vector<96x32xf32>, vector<32x128xf32>, vector<96x128xf32> -> vector<96x128xf32>
    %c1_23 = arith.constant 1 : index
    %c0_24 = arith.constant 0 : index
    %c0_25 = arith.constant 0 : index
    %46 = vector.load %arg5[%c1_23, %c0_24, %c0_25] : memref<3x96x1xf32, #tpu.memory_space<vmem>>, vector<1x96x1xf32>
    %47 = vector.shape_cast %46 : vector<1x96x1xf32> to vector<96x1xf32>
    %48 = vector.broadcast %47 : vector<96x1xf32> to vector<96x128xf32>
    %49 = arith.addf %45, %48 : vector<96x128xf32>
    %50 = math.tanh %49 : vector<96x128xf32>
    %51 = vector.extract_strided_slice %50 {offsets = [0, 0], sizes = [32, 128], strides = [1, 1]} : vector<96x128xf32> to vector<32x128xf32>
    %cst_26 = arith.constant 5.000000e-01 : f32
    %52 = vector.broadcast %cst_26 : f32 to vector<32x128xf32>
    %53 = arith.mulf %52, %51 : vector<32x128xf32>
    %cst_27 = arith.constant 5.000000e-01 : f32
    %54 = vector.broadcast %cst_27 : f32 to vector<32x128xf32>
    %55 = arith.addf %53, %54 : vector<32x128xf32>
    %56 = vector.extract_strided_slice %50 {offsets = [32, 0], sizes = [32, 128], strides = [1, 1]} : vector<96x128xf32> to vector<32x128xf32>
    %57 = vector.extract_strided_slice %50 {offsets = [64, 0], sizes = [32, 128], strides = [1, 1]} : vector<96x128xf32> to vector<32x128xf32>
    %cst_28 = arith.constant 5.000000e-01 : f32
    %58 = vector.broadcast %cst_28 : f32 to vector<32x128xf32>
    %59 = arith.mulf %58, %57 : vector<32x128xf32>
    %cst_29 = arith.constant 5.000000e-01 : f32
    %60 = vector.broadcast %cst_29 : f32 to vector<32x128xf32>
    %61 = arith.addf %59, %60 : vector<32x128xf32>
    %62 = arith.mulf %55, %56 : vector<32x128xf32>
    %63 = math.tanh %62 : vector<32x128xf32>
    %64 = arith.mulf %61, %63 : vector<32x128xf32>
    %c2 = arith.constant 2 : index
    %c0_30 = arith.constant 0 : index
    %c0_31 = arith.constant 0 : index
    %65 = vector.load %arg4[%c2, %c0_30, %c0_31] : memref<3x96x32xf32, #tpu.memory_space<vmem>>, vector<1x96x32xf32>
    %66 = vector.shape_cast %65 : vector<1x96x32xf32> to vector<96x32xf32>
    %cst_32 = arith.constant dense<0.000000e+00> : vector<96x128xf32>
    %67 = tpu.matmul %66, %64, %cst_32 {dimension_numbers = #tpu.dot_dimension_numbers<[1], [0], [0], [1], [0, 0, 1, 1], [], []>} : vector<96x32xf32>, vector<32x128xf32>, vector<96x128xf32> -> vector<96x128xf32>
    %c2_33 = arith.constant 2 : index
    %c0_34 = arith.constant 0 : index
    %c0_35 = arith.constant 0 : index
    %68 = vector.load %arg5[%c2_33, %c0_34, %c0_35] : memref<3x96x1xf32, #tpu.memory_space<vmem>>, vector<1x96x1xf32>
    %69 = vector.shape_cast %68 : vector<1x96x1xf32> to vector<96x1xf32>
    %70 = vector.broadcast %69 : vector<96x1xf32> to vector<96x128xf32>
    %71 = arith.addf %67, %70 : vector<96x128xf32>
    %72 = math.tanh %71 : vector<96x128xf32>
    %73 = vector.extract_strided_slice %72 {offsets = [0, 0], sizes = [32, 128], strides = [1, 1]} : vector<96x128xf32> to vector<32x128xf32>
    %cst_36 = arith.constant 5.000000e-01 : f32
    %74 = vector.broadcast %cst_36 : f32 to vector<32x128xf32>
    %75 = arith.mulf %74, %73 : vector<32x128xf32>
    %cst_37 = arith.constant 5.000000e-01 : f32
    %76 = vector.broadcast %cst_37 : f32 to vector<32x128xf32>
    %77 = arith.addf %75, %76 : vector<32x128xf32>
    %78 = vector.extract_strided_slice %72 {offsets = [32, 0], sizes = [32, 128], strides = [1, 1]} : vector<96x128xf32> to vector<32x128xf32>
    %79 = vector.extract_strided_slice %72 {offsets = [64, 0], sizes = [32, 128], strides = [1, 1]} : vector<96x128xf32> to vector<32x128xf32>
    %cst_38 = arith.constant 5.000000e-01 : f32
    %80 = vector.broadcast %cst_38 : f32 to vector<32x128xf32>
    %81 = arith.mulf %80, %79 : vector<32x128xf32>
    %cst_39 = arith.constant 5.000000e-01 : f32
    %82 = vector.broadcast %cst_39 : f32 to vector<32x128xf32>
    %83 = arith.addf %81, %82 : vector<32x128xf32>
    %84 = arith.mulf %77, %78 : vector<32x128xf32>
    %85 = math.tanh %84 : vector<32x128xf32>
    %86 = arith.mulf %83, %85 : vector<32x128xf32>
    %c0_40 = arith.constant 0 : index
    %c0_41 = arith.constant 0 : index
    %87 = vector.load %arg6[%c0_40, %c0_41] : memref<32x1xf32, #tpu.memory_space<vmem>>, vector<32x1xf32>
    %88 = vector.broadcast %87 : vector<32x1xf32> to vector<32x128xf32>
    %89 = arith.mulf %88, %86 : vector<32x128xf32>
    %cst_42 = arith.constant dense<0.000000e+00> : vector<128xf32>
    %90 = vector.multi_reduction <add>, %89, %cst_42 [0] : vector<32x128xf32> to vector<128xf32>
    %91 = vector.shape_cast %90 : vector<128xf32> to vector<1x128xf32>
    %c0_43 = arith.constant 0 : index
    %c0_44 = arith.constant 0 : index
    %92 = vector.load %arg7[%c0_43, %c0_44] : memref<1x1xf32, #tpu.memory_space<vmem>>, vector<1x1xf32>
    %93 = vector.broadcast %92 : vector<1x1xf32> to vector<1x128xf32>
    %94 = arith.addf %91, %93 : vector<1x128xf32>
    %95 = math.tanh %94 : vector<1x128xf32>
    %cst_45 = arith.constant 5.000000e-01 : f32
    %96 = vector.broadcast %cst_45 : f32 to vector<1x128xf32>
    %97 = arith.mulf %96, %95 : vector<1x128xf32>
    %cst_46 = arith.constant 5.000000e-01 : f32
    %98 = vector.broadcast %cst_46 : f32 to vector<1x128xf32>
    %99 = arith.addf %97, %98 : vector<1x128xf32>
    %c0_47 = arith.constant 0 : index
    %c0_48 = arith.constant 0 : index
    %100 = vector.load %arg8[%c0_47, %c0_48] : memref<1x128xf32, #tpu.memory_space<vmem>>, vector<1x128xf32>
    tpu.vector_store %arg8[%c0_47, %c0_48], %99 {strides = array<i32>} : memref<1x128xf32, #tpu.memory_space<vmem>>, vector<1x128xf32>,
    return
  }
  func.func @transform_0(%arg0: i32) -> (i32, i32) {
    %c0_i32 = arith.constant 0 : i32
    %c0_i32_0 = arith.constant 0 : i32
    return %arg0, %c0_i32 : i32, i32
  }
  func.func @transform_1(%arg0: i32) -> (i32, i32) {
    %c0_i32 = arith.constant 0 : i32
    %c0_i32_0 = arith.constant 0 : i32
    %c0_i32_1 = arith.constant 0 : i32
    return %c0_i32, %c0_i32_0 : i32, i32
  }
  func.func @transform_2(%arg0: i32) -> (i32, i32) {
    %c0_i32 = arith.constant 0 : i32
    %c0_i32_0 = arith.constant 0 : i32
    %c0_i32_1 = arith.constant 0 : i32
    return %c0_i32, %c0_i32_0 : i32, i32
  }
  func.func @transform_3(%arg0: i32) -> (i32, i32, i32) {
    %c0_i32 = arith.constant 0 : i32
    %c0_i32_0 = arith.constant 0 : i32
    %c0_i32_1 = arith.constant 0 : i32
    %c0_i32_2 = arith.constant 0 : i32
    return %c0_i32, %c0_i32_0, %c0_i32_1 : i32, i32, i32
  }
  func.func @transform_4(%arg0: i32) -> (i32, i32, i32) {
    %c0_i32 = arith.constant 0 : i32
    %c0_i32_0 = arith.constant 0 : i32
    %c0_i32_1 = arith.constant 0 : i32
    %c0_i32_2 = arith.constant 0 : i32
    return %c0_i32, %c0_i32_0, %c0_i32_1 : i32, i32, i32
  }
  func.func @transform_5(%arg0: i32) -> (i32, i32) {
    %c0_i32 = arith.constant 0 : i32
    %c0_i32_0 = arith.constant 0 : i32
    %c0_i32_1 = arith.constant 0 : i32
    return %c0_i32, %c0_i32_0 : i32, i32
  }
  func.func @transform_6(%arg0: i32) -> (i32, i32) {
    %c0_i32 = arith.constant 0 : i32
    %c0_i32_0 = arith.constant 0 : i32
    %c0_i32_1 = arith.constant 0 : i32
    return %c0_i32, %c0_i32_0 : i32, i32
  }
  func.func @transform_7(%arg0: i32) -> (i32, i32) {
    %c0_i32 = arith.constant 0 : i32
    %c0_i32_0 = arith.constant 0 : i32
    return %c0_i32, %arg0 : i32, i32
  }
}

</mosaic_0001>

<llo_original>
// kernel: tpu_custom_call.1
$region0: #{tpu_custom_call.1}
  #allocation0 [shape = 'u32[]', space=smem, size = 0x4, offset = 0x4, fixed_abs, tag = 'smem constant byte address 0x4 - core index']
  #allocation1 [shape = 'u32[144,128]{1,0:T(1,128)}', space=vmem, size = 0x12000, scoped, tag = 'internal scratch']
  #allocation2 [shape = 'f32[1,1]{1,0:T(1,128)S(1)}', space=vmem, size = 0x200, scoped, tag = 'scoped memory for tpu_custom_call.1']
  %s0 = inlined_call_operand.vmem [shape: f32[8,16], index: 0, kind: input, shape index: {}]
  %s1 = inlined_call_operand.vmem [shape: f32[96,16], index: 1, kind: input, shape index: {}]
  %s2 = inlined_call_operand.vmem [shape: f32[96,1], index: 2, kind: input, shape index: {}]
  %s3 = inlined_call_operand.vmem [shape: f32[3,96,32], index: 3, kind: input, shape index: {}]
  %s4 = inlined_call_operand.vmem [shape: f32[3,96,1], index: 4, kind: input, shape index: {}]
  %s5 = inlined_call_operand.vmem [shape: f32[32,1], index: 5, kind: input, shape index: {}]
  %s6 = inlined_call_operand.<no memory space> [shape: f32[1,1], index: 6, kind: input, shape index: {}]
  %s7 = inlined_call_operand.hbm [shape: f32[1,128], index: 7, kind: output, shape index: {}]
  %s8 = sld [smem:[#allocation0]]
  $region38: #{tpu_custom_call.1} parent=0
    _
  %s10 = ssub.s32 1, %s8
  %s11 = scalar_select 0, %s10, %s8
  %v12 = vstv %s6
  %13 = vst [vmem:[#allocation2] sm:$0x1] %v12
  $region1: #{tpu_custom_call.1} parent=0
    #allocation3 [shape = 'u8[512]{0}', space=vmem, size = 0x400, scoped, tag = 'output window, operand 0, single buffered']
    #allocation4 [shape = 's32[1]{0}', space=sflag, size = 0x4, scoped, tag = 'scoped memory for tpu_custom_call.1']
    %14 = vsyncpa [#allocation4], 0
    // Predicated region
    $region2: #{tpu_custom_call.1} parent=1 // pred_check
      _
    $region3: #{tpu_custom_call.1} parent=1 // pred_check_branch
      %16 = sbr.rel (0) target = $region5
    $region4: #{tpu_custom_call.1} parent=1 // pred_region
      _
    $region5: #{tpu_custom_call.1} parent=1 // pred_fallthru
      _
    // Predicated region
    $region6: #{tpu_custom_call.1} parent=1 // pred_check
      _
    $region7: #{tpu_custom_call.1} parent=1 // pred_check_branch
      %18 = sbr.rel (0) target = $region9
    $region8: #{tpu_custom_call.1} parent=1 // pred_region
      _
    $region9: #{tpu_custom_call.1} parent=1 // pred_fallthru
      _
    // Predicated region
    $region10: #{tpu_custom_call.1} parent=1 // pred_check
      _
    $region11: #{tpu_custom_call.1} parent=1 // pred_check_branch
      %20 = sbr.rel (0) target = $region13
    $region12: #{tpu_custom_call.1} parent=1 // pred_region
      _
    $region13: #{tpu_custom_call.1} parent=1 // pred_fallthru
      _
    // Predicated region
    $region14: #{tpu_custom_call.1} parent=1 // pred_check
      _
    $region15: #{tpu_custom_call.1} parent=1 // pred_check_branch
      %22 = sbr.rel (0) target = $region17
    $region16: #{tpu_custom_call.1} parent=1 // pred_region
      _
    $region17: #{tpu_custom_call.1} parent=1 // pred_fallthru
      _
    // Predicated region
    $region18: #{tpu_custom_call.1} parent=1 // pred_check
      _
    $region19: #{tpu_custom_call.1} parent=1 // pred_check_branch
      %24 = sbr.rel (0) target = $region21
    $region20: #{tpu_custom_call.1} parent=1 // pred_region
      _
    $region21: #{tpu_custom_call.1} parent=1 // pred_fallthru
      _
    // Predicated region
    $region22: #{tpu_custom_call.1} parent=1 // pred_check
      _
    $region23: #{tpu_custom_call.1} parent=1 // pred_check_branch
      %26 = sbr.rel (0) target = $region25
    $region24: #{tpu_custom_call.1} parent=1 // pred_region
      _
    $region25: #{tpu_custom_call.1} parent=1 // pred_fallthru
      _
    // Predicated region
    $region26: #{tpu_custom_call.1} parent=1 // pred_check
      _
    $region27: #{tpu_custom_call.1} parent=1 // pred_check_branch
      %28 = sbr.rel (0) target = $region29
    $region28: #{tpu_custom_call.1} parent=1 // pred_region
      _
    $region29: #{tpu_custom_call.1} parent=1 // pred_fallthru
      _
    %v29 = vld [vmem:[%s0] sm:$0xff]
    %v30 = vld [vmem:[%s0 + $0x8] sm:$0xff]
    %v31 = vld [vmem:[%s0 + $0x10] sm:$0xff]
    %v32 = vld [vmem:[%s0 + $0x18] sm:$0xff]
    %v33 = vld [vmem:[%s0 + $0x20] sm:$0xff]
    %v34 = vld [vmem:[%s0 + $0x28] sm:$0xff]
    %v35 = vld [vmem:[%s0 + $0x30] sm:$0xff]
    %v36 = vld [vmem:[%s0 + $0x38] sm:$0xff]
    %v37 = vld [vmem:[%s0 + $0x40] sm:$0xff]
    %v38 = vld [vmem:[%s0 + $0x48] sm:$0xff]
    %v39 = vld [vmem:[%s0 + $0x50] sm:$0xff]
    %v40 = vld [vmem:[%s0 + $0x58] sm:$0xff]
    %v41 = vld [vmem:[%s0 + $0x60] sm:$0xff]
    %v42 = vld [vmem:[%s0 + $0x68] sm:$0xff]
    %v43 = vld [vmem:[%s0 + $0x70] sm:$0xff]
    %v44 = vld [vmem:[%s0 + $0x78] sm:$0xff]
    %v45 = vld [vmem:[%s1] sm:$0xff]
    %v46 = vld [vmem:[%s1 + $0x8] sm:$0xff]
    %v47 = vld [vmem:[%s1 + $0x10] sm:$0xff]
    %v48 = vld [vmem:[%s1 + $0x18] sm:$0xff]
    %v49 = vld [vmem:[%s1 + $0x20] sm:$0xff]
    %v50 = vld [vmem:[%s1 + $0x28] sm:$0xff]
    %v51 = vld [vmem:[%s1 + $0x30] sm:$0xff]
    %v52 = vld [vmem:[%s1 + $0x38] sm:$0xff]
    %v53 = vld [vmem:[%s1 + $0x40] sm:$0xff]
    %v54 = vld [vmem:[%s1 + $0x48] sm:$0xff]
    %v55 = vld [vmem:[%s1 + $0x50] sm:$0xff]
    %v56 = vld [vmem:[%s1 + $0x58] sm:$0xff]
    %v57 = vld [vmem:[%s2] sm:$0xff]
    %v58 = vld [vmem:[%s2 + $0x8] sm:$0xff]
    %v59 = vld [vmem:[%s2 + $0x10] sm:$0xff]
    %v60 = vld [vmem:[%s2 + $0x18] sm:$0xff]
    %v61 = vld [vmem:[%s2 + $0x20] sm:$0xff]
    %v62 = vld [vmem:[%s2 + $0x28] sm:$0xff]
    %v63 = vld [vmem:[%s2 + $0x30] sm:$0xff]
    %v64 = vld [vmem:[%s2 + $0x38] sm:$0xff]
    %v65 = vld [vmem:[%s2 + $0x40] sm:$0xff]
    %v66 = vld [vmem:[%s2 + $0x48] sm:$0xff]
    %v67 = vld [vmem:[%s2 + $0x50] sm:$0xff]
    %v68 = vld [vmem:[%s2 + $0x58] sm:$0xff]
    %70 = vset.pattern.permute.xlu0 0
    %71 = vperm.xlu0 %70, %v57
    %v72 = vpop.permute.xlu0 %71
    %75 = vset.pattern.permute.xlu0 0
    %76 = vperm.xlu0 %75, %v58
    %v77 = vpop.permute.xlu0 %76
    %80 = vset.pattern.permute.xlu0 0
    %81 = vperm.xlu0 %80, %v59
    %v82 = vpop.permute.xlu0 %81
    %85 = vset.pattern.permute.xlu0 0
    %86 = vperm.xlu0 %85, %v60
    %v87 = vpop.permute.xlu0 %86
    %90 = vset.pattern.permute.xlu0 0
    %91 = vperm.xlu0 %90, %v61
    %v92 = vpop.permute.xlu0 %91
    %95 = vset.pattern.permute.xlu0 0
    %96 = vperm.xlu0 %95, %v62
    %v97 = vpop.permute.xlu0 %96
    %100 = vset.pattern.permute.xlu0 0
    %101 = vperm.xlu0 %100, %v63
    %v102 = vpop.permute.xlu0 %101
    %105 = vset.pattern.permute.xlu0 0
    %106 = vperm.xlu0 %105, %v64
    %v107 = vpop.permute.xlu0 %106
    %110 = vset.pattern.permute.xlu0 0
    %111 = vperm.xlu0 %110, %v65
    %v112 = vpop.permute.xlu0 %111
    %115 = vset.pattern.permute.xlu0 0
    %116 = vperm.xlu0 %115, %v66
    %v117 = vpop.permute.xlu0 %116
    %120 = vset.pattern.permute.xlu0 0
    %121 = vperm.xlu0 %120, %v67
    %v122 = vpop.permute.xlu0 %121
    %125 = vset.pattern.permute.xlu0 0
    %126 = vperm.xlu0 %125, %v68
    %v127 = vpop.permute.xlu0 %126
    %vm129 = vcmask 130048
    %v131 = vsel %vm129, %v45, 0
    %v134 = vsel %vm129, %v46, 0
    %v137 = vsel %vm129, %v47, 0
    %v140 = vsel %vm129, %v48, 0
    %v143 = vsel %vm129, %v49, 0
    %v146 = vsel %vm129, %v50, 0
    %v149 = vsel %vm129, %v51, 0
    %v152 = vsel %vm129, %v52, 0
    %v155 = vsel %vm129, %v53, 0
    %v158 = vsel %vm129, %v54, 0
    %v161 = vsel %vm129, %v55, 0
    %v164 = vsel %vm129, %v56, 0
    %v167 = vsel %vm129, %v29, 0
    %v170 = vsel %vm129, %v30, 0
    %v173 = vsel %vm129, %v31, 0
    %v176 = vsel %vm129, %v32, 0
    %v179 = vsel %vm129, %v33, 0
    %v182 = vsel %vm129, %v34, 0
    %v185 = vsel %vm129, %v35, 0
    %v188 = vsel %vm129, %v36, 0
    %v191 = vsel %vm129, %v37, 0
    %v194 = vsel %vm129, %v38, 0
    %v197 = vsel %vm129, %v39, 0
    %v200 = vsel %vm129, %v40, 0
    %v203 = vsel %vm129, %v41, 0
    %v206 = vsel %vm129, %v42, 0
    %v209 = vsel %vm129, %v43, 0
    %v212 = vsel %vm129, %v44, 0
    %214 = vmatprep.subr.mxu0 0.0
    %215 = vmatpush1.xpose.msra.mxu0 %v167
    %216 = vmatprep.subr.mxu0 0.0
    %217 = vmatpush1.xpose.msra.mxu0 %v170
    %218 = vmatprep.subr.mxu0 0.0
    %219 = vmatpush1.xpose.msra.mxu0 %v173
    %220 = vmatprep.subr.mxu0 0.0
    %221 = vmatpush1.xpose.msra.mxu0 %v176
    %222 = vmatprep.subr.mxu0 0.0
    %223 = vmatpush1.xpose.msra.mxu0 %v179
    %224 = vmatprep.subr.mxu0 0.0
    %225 = vmatpush1.xpose.msra.mxu0 %v182
    %226 = vmatprep.subr.mxu0 0.0
    %227 = vmatpush1.xpose.msra.mxu0 %v185
    %228 = vmatprep.subr.mxu0 0.0
    %229 = vmatpush1.xpose.msra.mxu0 %v188
    %230 = vmatprep.subr.mxu0 0.0
    %231 = vmatpush1.xpose.msra.mxu0 %v191
    %232 = vmatprep.subr.mxu0 0.0
    %233 = vmatpush1.xpose.msra.mxu0 %v194
    %234 = vmatprep.subr.mxu0 0.0
    %235 = vmatpush1.xpose.msra.mxu0 %v197
    %236 = vmatprep.subr.mxu0 0.0
    %237 = vmatpush1.xpose.msra.mxu0 %v200
    %238 = vmatprep.subr.mxu0 0.0
    %239 = vmatpush1.xpose.msra.mxu0 %v203
    %240 = vmatprep.subr.mxu0 0.0
    %241 = vmatpush1.xpose.msra.mxu0 %v206
    %242 = vmatprep.subr.mxu0 0.0
    %243 = vmatpush1.xpose.msra.mxu0 %v209
    %244 = vmatprep.subr.mxu0 0.0
    %245 = vmatpush1.xpose.msra.mxu0 %v212
    %246 = vmatprep.subr.mxu0 0.0
    %247 = vmatpush1.xpose.msra.mxu0 0.0
    %248 = vmatprep.subr.mxu0 0.0
    %249 = vmatpush1.xpose.msra.mxu0 0.0
    %250 = vmatprep.subr.mxu0 0.0
    %251 = vmatpush1.xpose.msra.mxu0 0.0
    %252 = vmatprep.subr.mxu0 0.0
    %253 = vmatpush1.xpose.msra.mxu0 0.0
    %254 = vmatprep.subr.mxu0 0.0
    %255 = vmatpush1.xpose.msra.mxu0 0.0
    %256 = vmatprep.subr.mxu0 0.0
    %257 = vmatpush1.xpose.msra.mxu0 0.0
    %258 = vmatprep.subr.mxu0 0.0
    %259 = vmatpush1.xpose.msra.mxu0 0.0
    %260 = vmatprep.subr.mxu0 0.0
    %261 = vmatpush1.xpose.msra.mxu0 0.0
    %262 = vmatprep.subr.mxu0 0.0
    %263 = vmatpush1.xpose.msra.mxu0 0.0
    %264 = vmatprep.subr.mxu0 0.0
    %265 = vmatpush1.xpose.msra.mxu0 0.0
    %266 = vmatprep.subr.mxu0 0.0
    %267 = vmatpush1.xpose.msra.mxu0 0.0
    %268 = vmatprep.subr.mxu0 0.0
    %269 = vmatpush1.xpose.msra.mxu0 0.0
    %270 = vmatprep.subr.mxu0 0.0
    %271 = vmatpush1.xpose.msra.mxu0 0.0
    %272 = vmatprep.subr.mxu0 0.0
    %273 = vmatpush1.xpose.msra.mxu0 0.0
    %274 = vmatprep.subr.mxu0 0.0
    %275 = vmatpush1.xpose.msra.mxu0 0.0
    %276 = vmatprep.subr.mxu0 0.0
    %277 = vmatpush1.xpose.msra.mxu0 0.0
    %278 = vmatprep.mubr.f32.mxu0 0.0
    %279 = vmatmul.mubr.f32.gmra.mrb[0].mxu0 %v131
    %v280 = vpop.f32.mrb[0].mxu0
    %v281 = vadd.f32 %v72, %v280
    %v282 = vpop.f32.mrb[0].mxu0
    %283 = vmatprep.mubr.f32.mxu0 0.0
    %284 = vmatmul.mubr.f32.gmra.mrb[0].mxu0 %v134
    %v285 = vpop.f32.mrb[0].mxu0
    %v286 = vadd.f32 %v77, %v285
    %v287 = vpop.f32.mrb[0].mxu0
    %288 = vmatprep.mubr.f32.mxu0 0.0
    %289 = vmatmul.mubr.f32.gmra.mrb[0].mxu0 %v137
    %v290 = vpop.f32.mrb[0].mxu0
    %v291 = vadd.f32 %v82, %v290
    %v292 = vpop.f32.mrb[0].mxu0
    %293 = vmatprep.mubr.f32.mxu0 0.0
    %294 = vmatmul.mubr.f32.gmra.mrb[0].mxu0 %v140
    %v295 = vpop.f32.mrb[0].mxu0
    %v296 = vadd.f32 %v87, %v295
    %v297 = vpop.f32.mrb[0].mxu0
    %298 = vmatprep.mubr.f32.mxu0 0.0
    %299 = vmatmul.mubr.f32.gmra.mrb[0].mxu0 %v143
    %v300 = vpop.f32.mrb[0].mxu0
    %v301 = vadd.f32 %v92, %v300
    %v302 = vpop.f32.mrb[0].mxu0
    %303 = vmatprep.mubr.f32.mxu0 0.0
    %304 = vmatmul.mubr.f32.gmra.mrb[0].mxu0 %v146
    %v305 = vpop.f32.mrb[0].mxu0
    %v306 = vadd.f32 %v97, %v305
    %v307 = vpop.f32.mrb[0].mxu0
    %308 = vmatprep.mubr.f32.mxu0 0.0
    %309 = vmatmul.mubr.f32.gmra.mrb[0].mxu0 %v149
    %v310 = vpop.f32.mrb[0].mxu0
    %v311 = vadd.f32 %v102, %v310
    %v312 = vpop.f32.mrb[0].mxu0
    %313 = vmatprep.mubr.f32.mxu0 0.0
    %314 = vmatmul.mubr.f32.gmra.mrb[0].mxu0 %v152
    %v315 = vpop.f32.mrb[0].mxu0
    %v316 = vadd.f32 %v107, %v315
    %v317 = vpop.f32.mrb[0].mxu0
    %318 = vmatprep.mubr.f32.mxu0 0.0
    %319 = vmatmul.mubr.f32.gmra.mrb[0].mxu0 %v155
    %v320 = vpop.f32.mrb[0].mxu0
    %v321 = vadd.f32 %v112, %v320
    %v322 = vpop.f32.mrb[0].mxu0
    %323 = vmatprep.mubr.f32.mxu0 0.0
    %324 = vmatmul.mubr.f32.gmra.mrb[0].mxu0 %v158
    %v325 = vpop.f32.mrb[0].mxu0
    %v326 = vadd.f32 %v117, %v325
    %v327 = vpop.f32.mrb[0].mxu0
    %328 = vmatprep.mubr.f32.mxu0 0.0
    %329 = vmatmul.mubr.f32.gmra.mrb[0].mxu0 %v161
    %v330 = vpop.f32.mrb[0].mxu0
    %v331 = vadd.f32 %v122, %v330
    %v332 = vpop.f32.mrb[0].mxu0
    %333 = vmatprep.mubr.f32.mxu0 0.0
    %334 = vmatmul.mubr.f32.gmra.mrb[0].mxu0 %v164
    %v335 = vpop.f32.mrb[0].mxu0
    %v336 = vadd.f32 %v127, %v335
    %v337 = vpop.f32.mrb[0].mxu0
    %338 = vdwg.mxu0
    %v339 = vtanh.pop %v281
    %v340 = vtanh.pop %v286
    %v341 = vtanh.pop %v291
    %v342 = vtanh.pop %v296
    %v343 = vtanh.pop %v301
    %v344 = vtanh.pop %v306
    %v345 = vtanh.pop %v311
    %v346 = vtanh.pop %v316
    %v347 = vtanh.pop %v321
    %v348 = vtanh.pop %v326
    %v349 = vtanh.pop %v331
    %v350 = vtanh.pop %v336
    %v351 = vmul.f32 %v339, 0.5
    %v352 = vmul.f32 %v340, 0.5
    %v353 = vmul.f32 %v341, 0.5
    %v354 = vmul.f32 %v342, 0.5
    %v355 = vadd.f32 %v351, 0.5
    %v356 = vadd.f32 %v352, 0.5
    %v357 = vadd.f32 %v353, 0.5
    %v358 = vadd.f32 %v354, 0.5
    %v359 = vmul.f32 %v347, 0.5
    %v360 = vmul.f32 %v348, 0.5
    %v361 = vmul.f32 %v349, 0.5
    %v362 = vmul.f32 %v350, 0.5
    %v363 = vadd.f32 %v359, 0.5
    %v364 = vadd.f32 %v360, 0.5
    %v365 = vadd.f32 %v361, 0.5
    %v366 = vadd.f32 %v362, 0.5
    %v367 = vmul.f32 %v355, %v343
    %v368 = vmul.f32 %v356, %v344
    %v369 = vmul.f32 %v357, %v345
    %v370 = vmul.f32 %v358, %v346
    %v371 = vtanh.pop %v367
    %v372 = vtanh.pop %v368
    %v373 = vtanh.pop %v369
    %v374 = vtanh.pop %v370
    %v375 = vmul.f32 %v363, %v371
    %v376 = vmul.f32 %v364, %v372
    %v377 = vmul.f32 %v365, %v373
    %v378 = vmul.f32 %v366, %v374
    %v379 = vld [vmem:[%s3] sm:$0xff]
    %v380 = vld [vmem:[%s3 + $0x8] sm:$0xff]
    %v381 = vld [vmem:[%s3 + $0x10] sm:$0xff]
    %v382 = vld [vmem:[%s3 + $0x18] sm:$0xff]
    %v383 = vld [vmem:[%s3 + $0x20] sm:$0xff]
    %v384 = vld [vmem:[%s3 + $0x28] sm:$0xff]
    %v385 = vld [vmem:[%s3 + $0x30] sm:$0xff]
    %v386 = vld [vmem:[%s3 + $0x38] sm:$0xff]
    %v387 = vld [vmem:[%s3 + $0x40] sm:$0xff]
    %v388 = vld [vmem:[%s3 + $0x48] sm:$0xff]
    %v389 = vld [vmem:[%s3 + $0x50] sm:$0xff]
    %v390 = vld [vmem:[%s3 + $0x58] sm:$0xff]
    %v391 = vld [vmem:[%s4] sm:$0xff]
    %v392 = vld [vmem:[%s4 + $0x8] sm:$0xff]
    %v393 = vld [vmem:[%s4 + $0x10] sm:$0xff]
    %v394 = vld [vmem:[%s4 + $0x18] sm:$0xff]
    %v395 = vld [vmem:[%s4 + $0x20] sm:$0xff]
    %v396 = vld [vmem:[%s4 + $0x28] sm:$0xff]
    %v397 = vld [vmem:[%s4 + $0x30] sm:$0xff]
    %v398 = vld [vmem:[%s4 + $0x38] sm:$0xff]
    %v399 = vld [vmem:[%s4 + $0x40] sm:$0xff]
    %v400 = vld [vmem:[%s4 + $0x48] sm:$0xff]
    %v401 = vld [vmem:[%s4 + $0x50] sm:$0xff]
    %v402 = vld [vmem:[%s4 + $0x58] sm:$0xff]
    %404 = vset.pattern.permute.xlu0 0
    %405 = vperm.xlu0 %404, %v391
    %v406 = vpop.permute.xlu0 %405
    %409 = vset.pattern.permute.xlu0 0
    %410 = vperm.xlu0 %409, %v392
    %v411 = vpop.permute.xlu0 %410
    %414 = vset.pattern.permute.xlu0 0
    %415 = vperm.xlu0 %414, %v393
    %v416 = vpop.permute.xlu0 %415
    %419 = vset.pattern.permute.xlu0 0
    %420 = vperm.xlu0 %419, %v394
    %v421 = vpop.permute.xlu0 %420
    %424 = vset.pattern.permute.xlu0 0
    %425 = vperm.xlu0 %424, %v395
    %v426 = vpop.permute.xlu0 %425
    %429 = vset.pattern.permute.xlu0 0
    %430 = vperm.xlu0 %429, %v396
    %v431 = vpop.permute.xlu0 %430
    %434 = vset.pattern.permute.xlu0 0
    %435 = vperm.xlu0 %434, %v397
    %v436 = vpop.permute.xlu0 %435
    %439 = vset.pattern.permute.xlu0 0
    %440 = vperm.xlu0 %439, %v398
    %v441 = vpop.permute.xlu0 %440
    %444 = vset.pattern.permute.xlu0 0
    %445 = vperm.xlu0 %444, %v399
    %v446 = vpop.permute.xlu0 %445
    %449 = vset.pattern.permute.xlu0 0
    %450 = vperm.xlu0 %449, %v400
    %v451 = vpop.permute.xlu0 %450
    %454 = vset.pattern.permute.xlu0 0
    %455 = vperm.xlu0 %454, %v401
    %v456 = vpop.permute.xlu0 %455
    %459 = vset.pattern.permute.xlu0 0
    %460 = vperm.xlu0 %459, %v402
    %v461 = vpop.permute.xlu0 %460
    %vm463 = vcmask 261120
    %v465 = vsel %vm463, %v379, 0
    %v468 = vsel %vm463, %v380, 0
    %v471 = vsel %vm463, %v381, 0
    %v474 = vsel %vm463, %v382, 0
    %v477 = vsel %vm463, %v383, 0
    %v480 = vsel %vm463, %v384, 0
    %v483 = vsel %vm463, %v385, 0
    %v486 = vsel %vm463, %v386, 0
    %v489 = vsel %vm463, %v387, 0
    %v492 = vsel %vm463, %v388, 0
    %v495 = vsel %vm463, %v389, 0
    %v498 = vsel %vm463, %v390, 0
    %500 = vmatprep.subr.mxu0 0.0
    %501 = vmatpush1.msra.mxu0 %v375
    %502 = vmatprep.subr.mxu0 0.0
    %503 = vmatpush1.msra.mxu0 %v376
    %504 = vmatprep.subr.mxu0 0.0
    %505 = vmatpush1.msra.mxu0 %v377
    %506 = vmatprep.subr.mxu0 0.0
    %507 = vmatpush1.msra.mxu0 %v378
    %508 = vmatprep.subr.mxu0 0.0
    %509 = vmatpush1.msra.mxu0 0.0
    %510 = vmatprep.subr.mxu0 0.0
    %511 = vmatpush1.msra.mxu0 0.0
    %512 = vmatprep.subr.mxu0 0.0
    %513 = vmatpush1.msra.mxu0 0.0
    %514 = vmatprep.subr.mxu0 0.0
    %515 = vmatpush1.msra.mxu0 0.0
    %516 = vmatprep.subr.mxu0 0.0
    %517 = vmatpush1.msra.mxu0 0.0
    %518 = vmatprep.subr.mxu0 0.0
    %519 = vmatpush1.msra.mxu0 0.0
    %520 = vmatprep.subr.mxu0 0.0
    %521 = vmatpush1.msra.mxu0 0.0
    %522 = vmatprep.subr.mxu0 0.0
    %523 = vmatpush1.msra.mxu0 0.0
    %524 = vmatprep.subr.mxu0 0.0
    %525 = vmatpush1.msra.mxu0 0.0
    %526 = vmatprep.subr.mxu0 0.0
    %527 = vmatpush1.msra.mxu0 0.0
    %528 = vmatprep.subr.mxu0 0.0
    %529 = vmatpush1.msra.mxu0 0.0
    %530 = vmatprep.subr.mxu0 0.0
    %531 = vmatpush1.msra.mxu0 0.0
    %532 = vmatprep.subr.mxu0 0.0
    %533 = vmatpush1.msra.mxu0 0.0
    %534 = vmatprep.subr.mxu0 0.0
    %535 = vmatpush1.msra.mxu0 0.0
    %536 = vmatprep.subr.mxu0 0.0
    %537 = vmatpush1.msra.mxu0 0.0
    %538 = vmatprep.subr.mxu0 0.0
    %539 = vmatpush1.msra.mxu0 0.0
    %540 = vmatprep.subr.mxu0 0.0
    %541 = vmatpush1.msra.mxu0 0.0
    %542 = vmatprep.subr.mxu0 0.0
    %543 = vmatpush1.msra.mxu0 0.0
    %544 = vmatprep.subr.mxu0 0.0
    %545 = vmatpush1.msra.mxu0 0.0
    %546 = vmatprep.subr.mxu0 0.0
    %547 = vmatpush1.msra.mxu0 0.0
    %548 = vmatprep.subr.mxu0 0.0
    %549 = vmatpush1.msra.mxu0 0.0
    %550 = vmatprep.subr.mxu0 0.0
    %551 = vmatpush1.msra.mxu0 0.0
    %552 = vmatprep.subr.mxu0 0.0
    %553 = vmatpush1.msra.mxu0 0.0
    %554 = vmatprep.subr.mxu0 0.0
    %555 = vmatpush1.msra.mxu0 0.0
    %556 = vmatprep.subr.mxu0 0.0
    %557 = vmatpush1.msra.mxu0 0.0
    %558 = vmatprep.subr.mxu0 0.0
    %559 = vmatpush1.msra.mxu0 0.0
    %560 = vmatprep.subr.mxu0 0.0
    %561 = vmatpush1.msra.mxu0 0.0
    %562 = vmatprep.subr.mxu0 0.0
    %563 = vmatpush1.msra.mxu0 0.0
    %564 = vmatprep.mubr.f32.mxu0 0.0
    %565 = vmatmul.mubr.f32.gmra.mrb[0].mxu0 %v465
    %v566 = vpop.f32.mrb[0].mxu0
    %v567 = vadd.f32 %v406, %v566
    %v568 = vpop.f32.mrb[0].mxu0
    %569 = vmatprep.mubr.f32.mxu0 0.0
    %570 = vmatmul.mubr.f32.gmra.mrb[0].mxu0 %v468
    %v571 = vpop.f32.mrb[0].mxu0
    %v572 = vadd.f32 %v411, %v571
    %v573 = vpop.f32.mrb[0].mxu0
    %574 = vmatprep.mubr.f32.mxu0 0.0
    %575 = vmatmul.mubr.f32.gmra.mrb[0].mxu0 %v471
    %v576 = vpop.f32.mrb[0].mxu0
    %v577 = vadd.f32 %v416, %v576
    %v578 = vpop.f32.mrb[0].mxu0
    %579 = vmatprep.mubr.f32.mxu0 0.0
    %580 = vmatmul.mubr.f32.gmra.mrb[0].mxu0 %v474
    %v581 = vpop.f32.mrb[0].mxu0
    %v582 = vadd.f32 %v421, %v581
    %v583 = vpop.f32.mrb[0].mxu0
    %584 = vmatprep.mubr.f32.mxu0 0.0
    %585 = vmatmul.mubr.f32.gmra.mrb[0].mxu0 %v477
    %v586 = vpop.f32.mrb[0].mxu0
    %v587 = vadd.f32 %v426, %v586
    %v588 = vpop.f32.mrb[0].mxu0
    %589 = vmatprep.mubr.f32.mxu0 0.0
    %590 = vmatmul.mubr.f32.gmra.mrb[0].mxu0 %v480
    %v591 = vpop.f32.mrb[0].mxu0
    %v592 = vadd.f32 %v431, %v591
    %v593 = vpop.f32.mrb[0].mxu0
    %594 = vmatprep.mubr.f32.mxu0 0.0
    %595 = vmatmul.mubr.f32.gmra.mrb[0].mxu0 %v483
    %v596 = vpop.f32.mrb[0].mxu0
    %v597 = vadd.f32 %v436, %v596
    %v598 = vpop.f32.mrb[0].mxu0
    %599 = vmatprep.mubr.f32.mxu0 0.0
    %600 = vmatmul.mubr.f32.gmra.mrb[0].mxu0 %v486
    %v601 = vpop.f32.mrb[0].mxu0
    %v602 = vadd.f32 %v441, %v601
    %v603 = vpop.f32.mrb[0].mxu0
    %604 = vmatprep.mubr.f32.mxu0 0.0
    %605 = vmatmul.mubr.f32.gmra.mrb[0].mxu0 %v489
    %v606 = vpop.f32.mrb[0].mxu0
    %v607 = vadd.f32 %v446, %v606
    %v608 = vpop.f32.mrb[0].mxu0
    %609 = vmatprep.mubr.f32.mxu0 0.0
    %610 = vmatmul.mubr.f32.gmra.mrb[0].mxu0 %v492
    %v611 = vpop.f32.mrb[0].mxu0
    %v612 = vadd.f32 %v451, %v611
    %v613 = vpop.f32.mrb[0].mxu0
    %614 = vmatprep.mubr.f32.mxu0 0.0
    %615 = vmatmul.mubr.f32.gmra.mrb[0].mxu0 %v495
    %v616 = vpop.f32.mrb[0].mxu0
    %v617 = vadd.f32 %v456, %v616
    %v618 = vpop.f32.mrb[0].mxu0
    %619 = vmatprep.mubr.f32.mxu0 0.0
    %620 = vmatmul.mubr.f32.gmra.mrb[0].mxu0 %v498
    %v621 = vpop.f32.mrb[0].mxu0
    %v622 = vadd.f32 %v461, %v621
    %v623 = vpop.f32.mrb[0].mxu0
    %624 = vdwg.mxu0
    %v625 = vtanh.pop %v567
    %v626 = vtanh.pop %v572
    %v627 = vtanh.pop %v577
    %v628 = vtanh.pop %v582
    %v629 = vtanh.pop %v587
    %v630 = vtanh.pop %v592
    %v631 = vtanh.pop %v597
    %v632 = vtanh.pop %v602
    %v633 = vtanh.pop %v607
    %v634 = vtanh.pop %v612
    %v635 = vtanh.pop %v617
    %v636 = vtanh.pop %v622
    %v637 = vmul.f32 %v625, 0.5
    %v638 = vmul.f32 %v626, 0.5
    %v639 = vmul.f32 %v627, 0.5
    %v640 = vmul.f32 %v628, 0.5
    %v641 = vadd.f32 %v637, 0.5
    %v642 = vadd.f32 %v638, 0.5
    %v643 = vadd.f32 %v639, 0.5
    %v644 = vadd.f32 %v640, 0.5
    %v645 = vmul.f32 %v633, 0.5
    %v646 = vmul.f32 %v634, 0.5
    %v647 = vmul.f32 %v635, 0.5
    %v648 = vmul.f32 %v636, 0.5
    %v649 = vadd.f32 %v645, 0.5
    %v650 = vadd.f32 %v646, 0.5
    %v651 = vadd.f32 %v647, 0.5
    %v652 = vadd.f32 %v648, 0.5
    %v653 = vmul.f32 %v641, %v629
    %v654 = vmul.f32 %v642, %v630
    %v655 = vmul.f32 %v643, %v631
    %v656 = vmul.f32 %v644, %v632
    %v657 = vtanh.pop %v653
    %v658 = vtanh.pop %v654
    %v659 = vtanh.pop %v655
    %v660 = vtanh.pop %v656
    %v661 = vmul.f32 %v649, %v657
    %v662 = vmul.f32 %v650, %v658
    %v663 = vmul.f32 %v651, %v659
    %v664 = vmul.f32 %v652, %v660
    %s665 = scalar_lea.vmem %s3, 96
    %v666 = vld [vmem:[%s665] sm:$0xff]
    %v667 = vld [vmem:[%s665 + $0x8] sm:$0xff]
    %v668 = vld [vmem:[%s665 + $0x10] sm:$0xff]
    %v669 = vld [vmem:[%s665 + $0x18] sm:$0xff]
    %v670 = vld [vmem:[%s665 + $0x20] sm:$0xff]
    %v671 = vld [vmem:[%s665 + $0x28] sm:$0xff]
    %v672 = vld [vmem:[%s665 + $0x30] sm:$0xff]
    %v673 = vld [vmem:[%s665 + $0x38] sm:$0xff]
    %v674 = vld [vmem:[%s665 + $0x40] sm:$0xff]
    %v675 = vld [vmem:[%s665 + $0x48] sm:$0xff]
    %v676 = vld [vmem:[%s665 + $0x50] sm:$0xff]
    %v677 = vld [vmem:[%s665 + $0x58] sm:$0xff]
    %s678 = scalar_lea.vmem %s4, 96
    %v679 = vld [vmem:[%s678] sm:$0xff]
    %v680 = vld [vmem:[%s678 + $0x8] sm:$0xff]
    %v681 = vld [vmem:[%s678 + $0x10] sm:$0xff]
    %v682 = vld [vmem:[%s678 + $0x18] sm:$0xff]
    %v683 = vld [vmem:[%s678 + $0x20] sm:$0xff]
    %v684 = vld [vmem:[%s678 + $0x28] sm:$0xff]
    %v685 = vld [vmem:[%s678 + $0x30] sm:$0xff]
    %v686 = vld [vmem:[%s678 + $0x38] sm:$0xff]
    %v687 = vld [vmem:[%s678 + $0x40] sm:$0xff]
    %v688 = vld [vmem:[%s678 + $0x48] sm:$0xff]
    %v689 = vld [vmem:[%s678 + $0x50] sm:$0xff]
    %v690 = vld [vmem:[%s678 + $0x58] sm:$0xff]
    %692 = vset.pattern.permute.xlu0 0
    %693 = vperm.xlu0 %692, %v679
    %v694 = vpop.permute.xlu0 %693
    %697 = vset.pattern.permute.xlu0 0
    %698 = vperm.xlu0 %697, %v680
    %v699 = vpop.permute.xlu0 %698
    %702 = vset.pattern.permute.xlu0 0
    %703 = vperm.xlu0 %702, %v681
    %v704 = vpop.permute.xlu0 %703
    %707 = vset.pattern.permute.xlu0 0
    %708 = vperm.xlu0 %707, %v682
    %v709 = vpop.permute.xlu0 %708
    %712 = vset.pattern.permute.xlu0 0
    %713 = vperm.xlu0 %712, %v683
    %v714 = vpop.permute.xlu0 %713
    %717 = vset.pattern.permute.xlu0 0
    %718 = vperm.xlu0 %717, %v684
    %v719 = vpop.permute.xlu0 %718
    %722 = vset.pattern.permute.xlu0 0
    %723 = vperm.xlu0 %722, %v685
    %v724 = vpop.permute.xlu0 %723
    %727 = vset.pattern.permute.xlu0 0
    %728 = vperm.xlu0 %727, %v686
    %v729 = vpop.permute.xlu0 %728
    %732 = vset.pattern.permute.xlu0 0
    %733 = vperm.xlu0 %732, %v687
    %v734 = vpop.permute.xlu0 %733
    %737 = vset.pattern.permute.xlu0 0
    %738 = vperm.xlu0 %737, %v688
    %v739 = vpop.permute.xlu0 %738
    %742 = vset.pattern.permute.xlu0 0
    %743 = vperm.xlu0 %742, %v689
    %v744 = vpop.permute.xlu0 %743
    %747 = vset.pattern.permute.xlu0 0
    %748 = vperm.xlu0 %747, %v690
    %v749 = vpop.permute.xlu0 %748
    %v752 = vsel %vm463, %v666, 0
    %v755 = vsel %vm463, %v667, 0
    %v758 = vsel %vm463, %v668, 0
    %v761 = vsel %vm463, %v669, 0
    %v764 = vsel %vm463, %v670, 0
    %v767 = vsel %vm463, %v671, 0
    %v770 = vsel %vm463, %v672, 0
    %v773 = vsel %vm463, %v673, 0
    %v776 = vsel %vm463, %v674, 0
    %v779 = vsel %vm463, %v675, 0
    %v782 = vsel %vm463, %v676, 0
    %v785 = vsel %vm463, %v677, 0
    %787 = vmatprep.subr.mxu0 0.0
    %788 = vmatpush1.msra.mxu0 %v661
    %789 = vmatprep.subr.mxu0 0.0
    %790 = vmatpush1.msra.mxu0 %v662
    %791 = vmatprep.subr.mxu0 0.0
    %792 = vmatpush1.msra.mxu0 %v663
    %793 = vmatprep.subr.mxu0 0.0
    %794 = vmatpush1.msra.mxu0 %v664
    %795 = vmatprep.subr.mxu0 0.0
    %796 = vmatpush1.msra.mxu0 0.0
    %797 = vmatprep.subr.mxu0 0.0
    %798 = vmatpush1.msra.mxu0 0.0
    %799 = vmatprep.subr.mxu0 0.0
    %800 = vmatpush1.msra.mxu0 0.0
    %801 = vmatprep.subr.mxu0 0.0
    %802 = vmatpush1.msra.mxu0 0.0
    %803 = vmatprep.subr.mxu0 0.0
    %804 = vmatpush1.msra.mxu0 0.0
    %805 = vmatprep.subr.mxu0 0.0
    %806 = vmatpush1.msra.mxu0 0.0
    %807 = vmatprep.subr.mxu0 0.0
    %808 = vmatpush1.msra.mxu0 0.0
    %809 = vmatprep.subr.mxu0 0.0
    %810 = vmatpush1.msra.mxu0 0.0
    %811 = vmatprep.subr.mxu0 0.0
    %812 = vmatpush1.msra.mxu0 0.0
    %813 = vmatprep.subr.mxu0 0.0
    %814 = vmatpush1.msra.mxu0 0.0
    %815 = vmatprep.subr.mxu0 0.0
    %816 = vmatpush1.msra.mxu0 0.0
    %817 = vmatprep.subr.mxu0 0.0
    %818 = vmatpush1.msra.mxu0 0.0
    %819 = vmatprep.subr.mxu0 0.0
    %820 = vmatpush1.msra.mxu0 0.0
    %821 = vmatprep.subr.mxu0 0.0
    %822 = vmatpush1.msra.mxu0 0.0
    %823 = vmatprep.subr.mxu0 0.0
    %824 = vmatpush1.msra.mxu0 0.0
    %825 = vmatprep.subr.mxu0 0.0
    %826 = vmatpush1.msra.mxu0 0.0
    %827 = vmatprep.subr.mxu0 0.0
    %828 = vmatpush1.msra.mxu0 0.0
    %829 = vmatprep.subr.mxu0 0.0
    %830 = vmatpush1.msra.mxu0 0.0
    %831 = vmatprep.subr.mxu0 0.0
    %832 = vmatpush1.msra.mxu0 0.0
    %833 = vmatprep.subr.mxu0 0.0
    %834 = vmatpush1.msra.mxu0 0.0
    %835 = vmatprep.subr.mxu0 0.0
    %836 = vmatpush1.msra.mxu0 0.0
    %837 = vmatprep.subr.mxu0 0.0
    %838 = vmatpush1.msra.mxu0 0.0
    %839 = vmatprep.subr.mxu0 0.0
    %840 = vmatpush1.msra.mxu0 0.0
    %841 = vmatprep.subr.mxu0 0.0
    %842 = vmatpush1.msra.mxu0 0.0
    %843 = vmatprep.subr.mxu0 0.0
    %844 = vmatpush1.msra.mxu0 0.0
    %845 = vmatprep.subr.mxu0 0.0
    %846 = vmatpush1.msra.mxu0 0.0
    %847 = vmatprep.subr.mxu0 0.0
    %848 = vmatpush1.msra.mxu0 0.0
    %849 = vmatprep.subr.mxu0 0.0
    %850 = vmatpush1.msra.mxu0 0.0
    %851 = vmatprep.mubr.f32.mxu0 0.0
    %852 = vmatmul.mubr.f32.gmra.mrb[0].mxu0 %v752
    %v853 = vpop.f32.mrb[0].mxu0
    %v854 = vadd.f32 %v694, %v853
    %v855 = vpop.f32.mrb[0].mxu0
    %856 = vmatprep.mubr.f32.mxu0 0.0
    %857 = vmatmul.mubr.f32.gmra.mrb[0].mxu0 %v755
    %v858 = vpop.f32.mrb[0].mxu0
    %v859 = vadd.f32 %v699, %v858
    %v860 = vpop.f32.mrb[0].mxu0
    %861 = vmatprep.mubr.f32.mxu0 0.0
    %862 = vmatmul.mubr.f32.gmra.mrb[0].mxu0 %v758
    %v863 = vpop.f32.mrb[0].mxu0
    %v864 = vadd.f32 %v704, %v863
    %v865 = vpop.f32.mrb[0].mxu0
    %866 = vmatprep.mubr.f32.mxu0 0.0
    %867 = vmatmul.mubr.f32.gmra.mrb[0].mxu0 %v761
    %v868 = vpop.f32.mrb[0].mxu0
    %v869 = vadd.f32 %v709, %v868
    %v870 = vpop.f32.mrb[0].mxu0
    %871 = vmatprep.mubr.f32.mxu0 0.0
    %872 = vmatmul.mubr.f32.gmra.mrb[0].mxu0 %v764
    %v873 = vpop.f32.mrb[0].mxu0
    %v874 = vadd.f32 %v714, %v873
    %v875 = vpop.f32.mrb[0].mxu0
    %876 = vmatprep.mubr.f32.mxu0 0.0
    %877 = vmatmul.mubr.f32.gmra.mrb[0].mxu0 %v767
    %v878 = vpop.f32.mrb[0].mxu0
    %v879 = vadd.f32 %v719, %v878
    %v880 = vpop.f32.mrb[0].mxu0
    %881 = vmatprep.mubr.f32.mxu0 0.0
    %882 = vmatmul.mubr.f32.gmra.mrb[0].mxu0 %v770
    %v883 = vpop.f32.mrb[0].mxu0
    %v884 = vadd.f32 %v724, %v883
    %v885 = vpop.f32.mrb[0].mxu0
    %886 = vmatprep.mubr.f32.mxu0 0.0
    %887 = vmatmul.mubr.f32.gmra.mrb[0].mxu0 %v773
    %v888 = vpop.f32.mrb[0].mxu0
    %v889 = vadd.f32 %v729, %v888
    %v890 = vpop.f32.mrb[0].mxu0
    %891 = vmatprep.mubr.f32.mxu0 0.0
    %892 = vmatmul.mubr.f32.gmra.mrb[0].mxu0 %v776
    %v893 = vpop.f32.mrb[0].mxu0
    %v894 = vadd.f32 %v734, %v893
    %v895 = vpop.f32.mrb[0].mxu0
    %896 = vmatprep.mubr.f32.mxu0 0.0
    %897 = vmatmul.mubr.f32.gmra.mrb[0].mxu0 %v779
    %v898 = vpop.f32.mrb[0].mxu0
    %v899 = vadd.f32 %v739, %v898
    %v900 = vpop.f32.mrb[0].mxu0
    %901 = vmatprep.mubr.f32.mxu0 0.0
    %902 = vmatmul.mubr.f32.gmra.mrb[0].mxu0 %v782
    %v903 = vpop.f32.mrb[0].mxu0
    %v904 = vadd.f32 %v744, %v903
    %v905 = vpop.f32.mrb[0].mxu0
    %906 = vmatprep.mubr.f32.mxu0 0.0
    %907 = vmatmul.mubr.f32.gmra.mrb[0].mxu0 %v785
    %v908 = vpop.f32.mrb[0].mxu0
    %v909 = vadd.f32 %v749, %v908
    %v910 = vpop.f32.mrb[0].mxu0
    %911 = vdwg.mxu0
    %v912 = vtanh.pop %v854
    %v913 = vtanh.pop %v859
    %v914 = vtanh.pop %v864
    %v915 = vtanh.pop %v869
    %v916 = vtanh.pop %v874
    %v917 = vtanh.pop %v879
    %v918 = vtanh.pop %v884
    %v919 = vtanh.pop %v889
    %v920 = vtanh.pop %v894
    %v921 = vtanh.pop %v899
    %v922 = vtanh.pop %v904
    %v923 = vtanh.pop %v909
    %v924 = vmul.f32 %v912, 0.5
    %v925 = vmul.f32 %v913, 0.5
    %v926 = vmul.f32 %v914, 0.5
    %v927 = vmul.f32 %v915, 0.5
    %v928 = vadd.f32 %v924, 0.5
    %v929 = vadd.f32 %v925, 0.5
    %v930 = vadd.f32 %v926, 0.5
    %v931 = vadd.f32 %v927, 0.5
    %v932 = vmul.f32 %v920, 0.5
    %v933 = vmul.f32 %v921, 0.5
    %v934 = vmul.f32 %v922, 0.5
    %v935 = vmul.f32 %v923, 0.5
    %v936 = vadd.f32 %v932, 0.5
    %v937 = vadd.f32 %v933, 0.5
    %v938 = vadd.f32 %v934, 0.5
    %v939 = vadd.f32 %v935, 0.5
    %v940 = vmul.f32 %v928, %v916
    %v941 = vmul.f32 %v929, %v917
    %v942 = vmul.f32 %v930, %v918
    %v943 = vmul.f32 %v931, %v919
    %v944 = vtanh.pop %v940
    %v945 = vtanh.pop %v941
    %v946 = vtanh.pop %v942
    %v947 = vtanh.pop %v943
    %v948 = vmul.f32 %v936, %v944
    %v949 = vmul.f32 %v937, %v945
    %v950 = vmul.f32 %v938, %v946
    %v951 = vmul.f32 %v939, %v947
    %s952 = scalar_lea.vmem %s3, 192
    %v953 = vld [vmem:[%s952] sm:$0xff]
    %v954 = vld [vmem:[%s952 + $0x8] sm:$0xff]
    %v955 = vld [vmem:[%s952 + $0x10] sm:$0xff]
    %v956 = vld [vmem:[%s952 + $0x18] sm:$0xff]
    %v957 = vld [vmem:[%s952 + $0x20] sm:$0xff]
    %v958 = vld [vmem:[%s952 + $0x28] sm:$0xff]
    %v959 = vld [vmem:[%s952 + $0x30] sm:$0xff]
    %v960 = vld [vmem:[%s952 + $0x38] sm:$0xff]
    %v961 = vld [vmem:[%s952 + $0x40] sm:$0xff]
    %v962 = vld [vmem:[%s952 + $0x48] sm:$0xff]
    %v963 = vld [vmem:[%s952 + $0x50] sm:$0xff]
    %v964 = vld [vmem:[%s952 + $0x58] sm:$0xff]
    %s965 = scalar_lea.vmem %s4, 192
    %v966 = vld [vmem:[%s965] sm:$0xff]
    %v967 = vld [vmem:[%s965 + $0x8] sm:$0xff]
    %v968 = vld [vmem:[%s965 + $0x10] sm:$0xff]
    %v969 = vld [vmem:[%s965 + $0x18] sm:$0xff]
    %v970 = vld [vmem:[%s965 + $0x20] sm:$0xff]
    %v971 = vld [vmem:[%s965 + $0x28] sm:$0xff]
    %v972 = vld [vmem:[%s965 + $0x30] sm:$0xff]
    %v973 = vld [vmem:[%s965 + $0x38] sm:$0xff]
    %v974 = vld [vmem:[%s965 + $0x40] sm:$0xff]
    %v975 = vld [vmem:[%s965 + $0x48] sm:$0xff]
    %v976 = vld [vmem:[%s965 + $0x50] sm:$0xff]
    %v977 = vld [vmem:[%s965 + $0x58] sm:$0xff]
    %979 = vset.pattern.permute.xlu0 0
    %980 = vperm.xlu0 %979, %v966
    %v981 = vpop.permute.xlu0 %980
    %984 = vset.pattern.permute.xlu0 0
    %985 = vperm.xlu0 %984, %v967
    %v986 = vpop.permute.xlu0 %985
    %989 = vset.pattern.permute.xlu0 0
    %990 = vperm.xlu0 %989, %v968
    %v991 = vpop.permute.xlu0 %990
    %994 = vset.pattern.permute.xlu0 0
    %995 = vperm.xlu0 %994, %v969
    %v996 = vpop.permute.xlu0 %995
    %999 = vset.pattern.permute.xlu0 0
    %1000 = vperm.xlu0 %999, %v970
    %v1001 = vpop.permute.xlu0 %1000
    %1004 = vset.pattern.permute.xlu0 0
    %1005 = vperm.xlu0 %1004, %v971
    %v1006 = vpop.permute.xlu0 %1005
    %1009 = vset.pattern.permute.xlu0 0
    %1010 = vperm.xlu0 %1009, %v972
    %v1011 = vpop.permute.xlu0 %1010
    %1014 = vset.pattern.permute.xlu0 0
    %1015 = vperm.xlu0 %1014, %v973
    %v1016 = vpop.permute.xlu0 %1015
    %1019 = vset.pattern.permute.xlu0 0
    %1020 = vperm.xlu0 %1019, %v974
    %v1021 = vpop.permute.xlu0 %1020
    %1024 = vset.pattern.permute.xlu0 0
    %1025 = vperm.xlu0 %1024, %v975
    %v1026 = vpop.permute.xlu0 %1025
    %1029 = vset.pattern.permute.xlu0 0
    %1030 = vperm.xlu0 %1029, %v976
    %v1031 = vpop.permute.xlu0 %1030
    %1034 = vset.pattern.permute.xlu0 0
    %1035 = vperm.xlu0 %1034, %v977
    %v1036 = vpop.permute.xlu0 %1035
    %v1039 = vsel %vm463, %v953, 0
    %v1042 = vsel %vm463, %v954, 0
    %v1045 = vsel %vm463, %v955, 0
    %v1048 = vsel %vm463, %v956, 0
    %v1051 = vsel %vm463, %v957, 0
    %v1054 = vsel %vm463, %v958, 0
    %v1057 = vsel %vm463, %v959, 0
    %v1060 = vsel %vm463, %v960, 0
    %v1063 = vsel %vm463, %v961, 0
    %v1066 = vsel %vm463, %v962, 0
    %v1069 = vsel %vm463, %v963, 0
    %v1072 = vsel %vm463, %v964, 0
    %1074 = vmatprep.subr.mxu0 0.0
    %1075 = vmatpush1.msra.mxu0 %v948
    %1076 = vmatprep.subr.mxu0 0.0
    %1077 = vmatpush1.msra.mxu0 %v949
    %1078 = vmatprep.subr.mxu0 0.0
    %1079 = vmatpush1.msra.mxu0 %v950
    %1080 = vmatprep.subr.mxu0 0.0
    %1081 = vmatpush1.msra.mxu0 %v951
    %1082 = vmatprep.subr.mxu0 0.0
    %1083 = vmatpush1.msra.mxu0 0.0
    %1084 = vmatprep.subr.mxu0 0.0
    %1085 = vmatpush1.msra.mxu0 0.0
    %1086 = vmatprep.subr.mxu0 0.0
    %1087 = vmatpush1.msra.mxu0 0.0
    %1088 = vmatprep.subr.mxu0 0.0
    %1089 = vmatpush1.msra.mxu0 0.0
    %1090 = vmatprep.subr.mxu0 0.0
    %1091 = vmatpush1.msra.mxu0 0.0
    %1092 = vmatprep.subr.mxu0 0.0
    %1093 = vmatpush1.msra.mxu0 0.0
    %1094 = vmatprep.subr.mxu0 0.0
    %1095 = vmatpush1.msra.mxu0 0.0
    %1096 = vmatprep.subr.mxu0 0.0
    %1097 = vmatpush1.msra.mxu0 0.0
    %1098 = vmatprep.subr.mxu0 0.0
    %1099 = vmatpush1.msra.mxu0 0.0
    %1100 = vmatprep.subr.mxu0 0.0
    %1101 = vmatpush1.msra.mxu0 0.0
    %1102 = vmatprep.subr.mxu0 0.0
    %1103 = vmatpush1.msra.mxu0 0.0
    %1104 = vmatprep.subr.mxu0 0.0
    %1105 = vmatpush1.msra.mxu0 0.0
    %1106 = vmatprep.subr.mxu0 0.0
    %1107 = vmatpush1.msra.mxu0 0.0
    %1108 = vmatprep.subr.mxu0 0.0
    %1109 = vmatpush1.msra.mxu0 0.0
    %1110 = vmatprep.subr.mxu0 0.0
    %1111 = vmatpush1.msra.mxu0 0.0
    %1112 = vmatprep.subr.mxu0 0.0
    %1113 = vmatpush1.msra.mxu0 0.0
    %1114 = vmatprep.subr.mxu0 0.0
    %1115 = vmatpush1.msra.mxu0 0.0
    %1116 = vmatprep.subr.mxu0 0.0
    %1117 = vmatpush1.msra.mxu0 0.0
    %1118 = vmatprep.subr.mxu0 0.0
    %1119 = vmatpush1.msra.mxu0 0.0
    %1120 = vmatprep.subr.mxu0 0.0
    %1121 = vmatpush1.msra.mxu0 0.0
    %1122 = vmatprep.subr.mxu0 0.0
    %1123 = vmatpush1.msra.mxu0 0.0
    %1124 = vmatprep.subr.mxu0 0.0
    %1125 = vmatpush1.msra.mxu0 0.0
    %1126 = vmatprep.subr.mxu0 0.0
    %1127 = vmatpush1.msra.mxu0 0.0
    %1128 = vmatprep.subr.mxu0 0.0
    %1129 = vmatpush1.msra.mxu0 0.0
    %1130 = vmatprep.subr.mxu0 0.0
    %1131 = vmatpush1.msra.mxu0 0.0
    %1132 = vmatprep.subr.mxu0 0.0
    %1133 = vmatpush1.msra.mxu0 0.0
    %1134 = vmatprep.subr.mxu0 0.0
    %1135 = vmatpush1.msra.mxu0 0.0
    %1136 = vmatprep.subr.mxu0 0.0
    %1137 = vmatpush1.msra.mxu0 0.0
    %1138 = vmatprep.mubr.f32.mxu0 0.0
    %1139 = vmatmul.mubr.f32.gmra.mrb[0].mxu0 %v1039
    %v1140 = vpop.f32.mrb[0].mxu0
    %v1141 = vadd.f32 %v981, %v1140
    %v1142 = vpop.f32.mrb[0].mxu0
    %1143 = vmatprep.mubr.f32.mxu0 0.0
    %1144 = vmatmul.mubr.f32.gmra.mrb[0].mxu0 %v1042
    %v1145 = vpop.f32.mrb[0].mxu0
    %v1146 = vadd.f32 %v986, %v1145
    %v1147 = vpop.f32.mrb[0].mxu0
    %1148 = vmatprep.mubr.f32.mxu0 0.0
    %1149 = vmatmul.mubr.f32.gmra.mrb[0].mxu0 %v1045
    %v1150 = vpop.f32.mrb[0].mxu0
    %v1151 = vadd.f32 %v991, %v1150
    %v1152 = vpop.f32.mrb[0].mxu0
    %1153 = vmatprep.mubr.f32.mxu0 0.0
    %1154 = vmatmul.mubr.f32.gmra.mrb[0].mxu0 %v1048
    %v1155 = vpop.f32.mrb[0].mxu0
    %v1156 = vadd.f32 %v996, %v1155
    %v1157 = vpop.f32.mrb[0].mxu0
    %1158 = vmatprep.mubr.f32.mxu0 0.0
    %1159 = vmatmul.mubr.f32.gmra.mrb[0].mxu0 %v1051
    %v1160 = vpop.f32.mrb[0].mxu0
    %v1161 = vadd.f32 %v1001, %v1160
    %v1162 = vpop.f32.mrb[0].mxu0
    %1163 = vmatprep.mubr.f32.mxu0 0.0
    %1164 = vmatmul.mubr.f32.gmra.mrb[0].mxu0 %v1054
    %v1165 = vpop.f32.mrb[0].mxu0
    %v1166 = vadd.f32 %v1006, %v1165
    %v1167 = vpop.f32.mrb[0].mxu0
    %1168 = vmatprep.mubr.f32.mxu0 0.0
    %1169 = vmatmul.mubr.f32.gmra.mrb[0].mxu0 %v1057
    %v1170 = vpop.f32.mrb[0].mxu0
    %v1171 = vadd.f32 %v1011, %v1170
    %v1172 = vpop.f32.mrb[0].mxu0
    %1173 = vmatprep.mubr.f32.mxu0 0.0
    %1174 = vmatmul.mubr.f32.gmra.mrb[0].mxu0 %v1060
    %v1175 = vpop.f32.mrb[0].mxu0
    %v1176 = vadd.f32 %v1016, %v1175
    %v1177 = vpop.f32.mrb[0].mxu0
    %1178 = vmatprep.mubr.f32.mxu0 0.0
    %1179 = vmatmul.mubr.f32.gmra.mrb[0].mxu0 %v1063
    %v1180 = vpop.f32.mrb[0].mxu0
    %v1181 = vadd.f32 %v1021, %v1180
    %v1182 = vpop.f32.mrb[0].mxu0
    %1183 = vmatprep.mubr.f32.mxu0 0.0
    %1184 = vmatmul.mubr.f32.gmra.mrb[0].mxu0 %v1066
    %v1185 = vpop.f32.mrb[0].mxu0
    %v1186 = vadd.f32 %v1026, %v1185
    %v1187 = vpop.f32.mrb[0].mxu0
    %1188 = vmatprep.mubr.f32.mxu0 0.0
    %1189 = vmatmul.mubr.f32.gmra.mrb[0].mxu0 %v1069
    %v1190 = vpop.f32.mrb[0].mxu0
    %v1191 = vadd.f32 %v1031, %v1190
    %v1192 = vpop.f32.mrb[0].mxu0
    %1193 = vmatprep.mubr.f32.mxu0 0.0
    %1194 = vmatmul.mubr.f32.gmra.mrb[0].mxu0 %v1072
    %v1195 = vpop.f32.mrb[0].mxu0
    %v1196 = vadd.f32 %v1036, %v1195
    %v1197 = vpop.f32.mrb[0].mxu0
    %1198 = vdwg.mxu0
    %v1199 = vtanh.pop %v1141
    %v1200 = vtanh.pop %v1146
    %v1201 = vtanh.pop %v1151
    %v1202 = vtanh.pop %v1156
    %v1203 = vtanh.pop %v1161
    %v1204 = vtanh.pop %v1166
    %v1205 = vtanh.pop %v1171
    %v1206 = vtanh.pop %v1176
    %v1207 = vtanh.pop %v1181
    %v1208 = vtanh.pop %v1186
    %v1209 = vtanh.pop %v1191
    %v1210 = vtanh.pop %v1196
    %v1211 = vmul.f32 %v1199, 0.5
    %v1212 = vmul.f32 %v1200, 0.5
    %v1213 = vmul.f32 %v1201, 0.5
    %v1214 = vmul.f32 %v1202, 0.5
    %v1215 = vadd.f32 %v1211, 0.5
    %v1216 = vadd.f32 %v1212, 0.5
    %v1217 = vadd.f32 %v1213, 0.5
    %v1218 = vadd.f32 %v1214, 0.5
    %v1219 = vmul.f32 %v1207, 0.5
    %v1220 = vmul.f32 %v1208, 0.5
    %v1221 = vmul.f32 %v1209, 0.5
    %v1222 = vmul.f32 %v1210, 0.5
    %v1223 = vadd.f32 %v1219, 0.5
    %v1224 = vadd.f32 %v1220, 0.5
    %v1225 = vadd.f32 %v1221, 0.5
    %v1226 = vadd.f32 %v1222, 0.5
    %v1227 = vmul.f32 %v1215, %v1203
    %v1228 = vmul.f32 %v1216, %v1204
    %v1229 = vmul.f32 %v1217, %v1205
    %v1230 = vmul.f32 %v1218, %v1206
    %v1231 = vtanh.pop %v1227
    %v1232 = vtanh.pop %v1228
    %v1233 = vtanh.pop %v1229
    %v1234 = vtanh.pop %v1230
    %v1235 = vmul.f32 %v1223, %v1231
    %v1236 = vmul.f32 %v1224, %v1232
    %v1237 = vmul.f32 %v1225, %v1233
    %v1238 = vmul.f32 %v1226, %v1234
    %v1239 = vld [vmem:[%s5] sm:$0xff]
    %v1240 = vld [vmem:[%s5 + $0x8] sm:$0xff]
    %v1241 = vld [vmem:[%s5 + $0x10] sm:$0xff]
    %v1242 = vld [vmem:[%s5 + $0x18] sm:$0xff]
    %1244 = vset.pattern.permute.xlu0 0
    %1245 = vperm.xlu0 %1244, %v1239
    %v1246 = vpop.permute.xlu0 %1245
    %1249 = vset.pattern.permute.xlu0 0
    %1250 = vperm.xlu0 %1249, %v1240
    %v1251 = vpop.permute.xlu0 %1250
    %1254 = vset.pattern.permute.xlu0 0
    %1255 = vperm.xlu0 %1254, %v1241
    %v1256 = vpop.permute.xlu0 %1255
    %1259 = vset.pattern.permute.xlu0 0
    %1260 = vperm.xlu0 %1259, %v1242
    %v1261 = vpop.permute.xlu0 %1260
    %v1263 = vmul.f32 %v1246, %v1235
    %v1264 = vmul.f32 %v1251, %v1236
    %v1265 = vmul.f32 %v1256, %v1237
    %v1266 = vmul.f32 %v1261, %v1238
    %v1267 = vadd.f32 %v1263, %v1264
    %v1268 = vadd.f32 %v1267, %v1265
    %v1269 = vadd.f32 %v1268, %v1266
    %v1270 = vrot.slane %v1269, 4
    %v1271 = vadd.f32 %v1269, %v1270
    %v1272 = vrot.slane %v1271, 2
    %v1273 = vadd.f32 %v1271, %v1272
    %v1274 = vrot.slane %v1273, 1
    %v1275 = vadd.f32 %v1273, %v1274
    %v1276 = vld [vmem:[#allocation2] sm:$0x1]
    %1278 = vset.pattern.permute.xlu0 0
    %1279 = vperm.xlu0 %1278, %v1276
    %v1280 = vpop.permute.xlu0 %1279
    %v1282 = vlaneseq
    %v1283 = vshrl.u32 %v1282, 7
    %v1284 = vsub.s32 0, %v1283
    %v1285 = vrot.slane %v1280, %v1284
    %v1286 = vadd.f32 %v1275, %v1285
    %v1287 = vtanh.pop %v1286
    %v1288 = vmul.f32 %v1287, 0.5
    %v1289 = vadd.f32 %v1288, 0.5
    %1290 = vst [vmem:[#allocation3] sm:$0x1] %v1289
    // Predicated region
    $region30: #{tpu_custom_call.1} parent=1 // pred_check
      _
    $region31: #{tpu_custom_call.1} parent=1 // pred_check_branch
      %1292 = sbr.rel (0) target = $region33
    $region32: #{tpu_custom_call.1} parent=1 // pred_region
      %s1294 = ssub.s32 16, 16
      %1295 = vsyncadd [#allocation4], %s1294
      %s1297 = sshll.u32 [#allocation3], 4
      %s1298 = int_to_ptr.vmem [resolvable:$true] %s1297
      %1300 = dma.vmem_to_hbm [thread:$0]  %s1298, 16, %s7, [#allocation4]
    $region33: #{tpu_custom_call.1} parent=1 // pred_fallthru
      _
    // Predicated region
    $region34: #{tpu_custom_call.1} parent=1 // pred_check
      _
    $region35: #{tpu_custom_call.1} parent=1 // pred_check_branch
      %1302 = sbr.rel (0) target = $region37
    $region36: #{tpu_custom_call.1} parent=1 // pred_region
      %1303 = dma.done [#allocation4], 16
    $region37: #{tpu_custom_call.1} parent=1 // pred_fallthru
      _
    %1304 = vsyncpa [#allocation4], 1

</llo_original>
